<compile_context>
chip_gen: v7x
topology: tpu7x:2x2x1
jax: 0.10.0
libtpu: 0.0.40
codegen_flags: <defaults>
</compile_context>

<pallas_src>
import jax
import jax.numpy as jnp
from jax.experimental import pallas as pl
from jax.experimental.pallas import tpu as pltpu  # noqa: F401  (TPU-specific tuning hooks)

BN_EPS = 1e-5
LANES = 128  # lane-dense output width


def _model_kernel(x_ref, w1t_ref, w2p_ref, b2p_ref, gamma_ref, o_ref):
    # ---- linear1 (no bias; b1 cancels under BN mean subtraction): (B,3)->(B,4) ----
    x = x_ref[...]          # (B, 3)
    w1t = w1t_ref[...]      # (3, 4)  pre-transposed in wrapper
    h = (x[:, 0:1] * w1t[0:1, :]
         + x[:, 1:2] * w1t[1:2, :]
         + x[:, 2:3] * w1t[2:3, :])                               # (B, 4) VPU FMAs

    # ---- BatchNorm1d, training mode: batch mean / biased variance ----
    b = h.shape[0]
    inv_b = 1.0 / b                                               # trace-time constant
    mean = jnp.sum(h, axis=0, keepdims=True) * inv_b              # (1, 4)
    centered = h - mean
    var = jnp.sum(centered * centered, axis=0, keepdims=True) * inv_b
    scale = jax.lax.rsqrt(var + BN_EPS) * gamma_ref[...]          # (1, 4); rsqrt -> EUP
    hn = centered * scale                                         # (B, 4); beta folded into b2

    # ---- linear2 (K=4) into a 128-lane padded slab -> unmasked vst ----
    w2p = w2p_ref[...]      # (4, 128)  pre-transposed + zero-padded in wrapper
    out = (hn[:, 0:1] * w2p[0:1, :]
           + hn[:, 1:2] * w2p[1:2, :]
           + hn[:, 2:3] * w2p[2:3, :]
           + hn[:, 3:4] * w2p[3:4, :]
           + b2p_ref[...])                                        # (B, 128)
    o_ref[...] = out.astype(o_ref.dtype)


def model_forward(x, w1, b1, w2, b2, gamma, beta):
    """x: (B, 3) float32 -> (B, 5) float32.

    w1: (4, 3), b1: (4,), w2: (5, 4), b2: (5,), gamma/beta: (4,) -- nn.Linear /
    nn.BatchNorm1d parameter layouts. b1 is accepted for interface parity but is
    a mathematical no-op under training-mode BatchNorm (it cancels in `centered`),
    so it is not sent to the kernel. beta is folded into the linear2 bias.
    """
    del b1  # cancels exactly under BN's batch-mean subtraction
    B = x.shape[0]
    out_f = w2.shape[0]
    assert B > 1, "BatchNorm1d in training mode requires batch size > 1"

    # Wrapper-side layout plumbing (trace-time constants on tiny params, free at runtime):
    x = x.astype(jnp.float32)
    w1t = w1.T.astype(jnp.float32)                                   # (3, 4)
    w2t = w2.T.astype(jnp.float32)                                   # (4, 5)
    b2_eff = b2.astype(jnp.float32) + beta.astype(jnp.float32) @ w2t  # (5,)  fold BN beta

    w2t_p = jnp.zeros((w2t.shape[0], LANES), jnp.float32)
    w2t_p = w2t_p.at[:, :out_f].set(w2t)                              # (4, 128)
    b2_p = jnp.zeros((1, LANES), jnp.float32)
    b2_p = b2_p.at[:, :out_f].set(b2_eff.reshape(1, -1))              # (1, 128)
    gamma2 = gamma.reshape(1, -1).astype(jnp.float32)                 # (1, 4)

    # Shapes are tiny; every operand is a single full-array block resident in VMEM.
    full = lambda shape: pl.BlockSpec(shape, lambda: tuple(0 for _ in shape))

    out_padded = pl.pallas_call(
        _model_kernel,
        out_shape=jax.ShapeDtypeStruct((B, LANES), jnp.float32),
        grid=(),
        in_specs=[
            full(x.shape),
            full(w1t.shape),
            full(w2t_p.shape),
            full(b2_p.shape),
            full(gamma2.shape),
        ],
        out_specs=full((B, LANES)),
    )(x, w1t, w2t_p, b2_p, gamma2)

    return out_padded[:, :out_f]


def _reference(x, w1, b1, w2, b2, gamma, beta):
    h = x @ w1.T + b1
    mean = h.mean(axis=0, keepdims=True)
    var = ((h - mean) ** 2).mean(axis=0, keepdims=True)
    hn = (h - mean) / jnp.sqrt(var + BN_EPS) * gamma + beta
    return hn @ w2.T + b2


if __name__ == "__main__":
    key = jax.random.PRNGKey(0)
    k_x, k_w1, k_b1, k_w2, k_b2 = jax.random.split(key, 5)

    B = 8  # BatchNorm1d (train mode) needs B > 1
    x = jax.random.normal(k_x, (B, 3), dtype=jnp.float32)

    # nn.Linear parameter layouts: weight (out, in), bias (out,).
    w1 = jax.random.normal(k_w1, (4, 3), dtype=jnp.float32) * 0.5
    b1 = jax.random.normal(k_b1, (4,), dtype=jnp.float32) * 0.1
    w2 = jax.random.normal(k_w2, (5, 4), dtype=jnp.float32) * 0.5
    b2 = jax.random.normal(k_b2, (5,), dtype=jnp.float32) * 0.1
    # BatchNorm1d affine params: default init gamma=1, beta=0.
    gamma = jnp.ones((4,), dtype=jnp.float32)
    beta = jnp.zeros((4,), dtype=jnp.float32)

    out = model_forward(x, w1, b1, w2, b2, gamma, beta)
    out = jax.block_until_ready(out)

    ref = _reference(x, w1, b1, w2, b2, gamma, beta)
    assert out.shape == (B, 5), out.shape
    assert jnp.allclose(out, ref, atol=1e-5, rtol=1e-5), "mismatch vs reference"

    print("KERNEL_OK")
</pallas_src>

<mosaic_0001>
module attributes {stable_mosaic.version = 11 : i64} {
  func.func @_model_kernel(%arg0: memref<8x3xf32, #tpu.memory_space<vmem>>, %arg1: memref<3x4xf32, #tpu.memory_space<vmem>>, %arg2: memref<4x128xf32, #tpu.memory_space<vmem>>, %arg3: memref<1x128xf32, #tpu.memory_space<vmem>>, %arg4: memref<1x4xf32, #tpu.memory_space<vmem>>, %arg5: memref<8x128xf32, #tpu.memory_space<vmem>>) attributes {dimension_semantics = [], scalar_prefetch = 0 : i64, scratch_operands = 0 : i64, tpu.core_type = #tpu.core_type<tc>} {
    %c0 = arith.constant 0 : index
    %c0_0 = arith.constant 0 : index
    %0 = vector.load %arg0[%c0, %c0_0] : memref<8x3xf32, #tpu.memory_space<vmem>>, vector<8x3xf32>
    %c0_1 = arith.constant 0 : index
    %c0_2 = arith.constant 0 : index
    %1 = vector.load %arg1[%c0_1, %c0_2] : memref<3x4xf32, #tpu.memory_space<vmem>>, vector<3x4xf32>
    %2 = vector.extract_strided_slice %0 {offsets = [0, 0], sizes = [8, 1], strides = [1, 1]} : vector<8x3xf32> to vector<8x1xf32>
    %3 = vector.extract_strided_slice %1 {offsets = [0, 0], sizes = [1, 4], strides = [1, 1]} : vector<3x4xf32> to vector<1x4xf32>
    %4 = vector.broadcast %2 : vector<8x1xf32> to vector<8x4xf32>
    %5 = vector.broadcast %3 : vector<1x4xf32> to vector<8x4xf32>
    %6 = arith.mulf %4, %5 : vector<8x4xf32>
    %7 = vector.extract_strided_slice %0 {offsets = [0, 1], sizes = [8, 1], strides = [1, 1]} : vector<8x3xf32> to vector<8x1xf32>
    %8 = vector.extract_strided_slice %1 {offsets = [1, 0], sizes = [1, 4], strides = [1, 1]} : vector<3x4xf32> to vector<1x4xf32>
    %9 = vector.broadcast %7 : vector<8x1xf32> to vector<8x4xf32>
    %10 = vector.broadcast %8 : vector<1x4xf32> to vector<8x4xf32>
    %11 = arith.mulf %9, %10 : vector<8x4xf32>
    %12 = arith.addf %6, %11 : vector<8x4xf32>
    %13 = vector.extract_strided_slice %0 {offsets = [0, 2], sizes = [8, 1], strides = [1, 1]} : vector<8x3xf32> to vector<8x1xf32>
    %14 = vector.extract_strided_slice %1 {offsets = [2, 0], sizes = [1, 4], strides = [1, 1]} : vector<3x4xf32> to vector<1x4xf32>
    %15 = vector.broadcast %13 : vector<8x1xf32> to vector<8x4xf32>
    %16 = vector.broadcast %14 : vector<1x4xf32> to vector<8x4xf32>
    %17 = arith.mulf %15, %16 : vector<8x4xf32>
    %18 = arith.addf %12, %17 : vector<8x4xf32>
    %cst = arith.constant dense<0.000000e+00> : vector<4xf32>
    %19 = vector.multi_reduction <add>, %18, %cst [0] : vector<8x4xf32> to vector<4xf32>
    %20 = vector.shape_cast %19 : vector<4xf32> to vector<1x4xf32>
    %cst_3 = arith.constant 1.250000e-01 : f32
    %21 = vector.broadcast %cst_3 : f32 to vector<1x4xf32>
    %22 = arith.mulf %20, %21 : vector<1x4xf32>
    %23 = vector.broadcast %22 : vector<1x4xf32> to vector<8x4xf32>
    %24 = arith.subf %18, %23 : vector<8x4xf32>
    %25 = arith.mulf %24, %24 : vector<8x4xf32>
    %cst_4 = arith.constant dense<0.000000e+00> : vector<4xf32>
    %26 = vector.multi_reduction <add>, %25, %cst_4 [0] : vector<8x4xf32> to vector<4xf32>
    %27 = vector.shape_cast %26 : vector<4xf32> to vector<1x4xf32>
    %cst_5 = arith.constant 1.250000e-01 : f32
    %28 = vector.broadcast %cst_5 : f32 to vector<1x4xf32>
    %29 = arith.mulf %27, %28 : vector<1x4xf32>
    %cst_6 = arith.constant 9.99999974E-6 : f32
    %30 = vector.broadcast %cst_6 : f32 to vector<1x4xf32>
    %31 = arith.addf %29, %30 : vector<1x4xf32>
    %32 = math.rsqrt %31 : vector<1x4xf32>
    %c0_7 = arith.constant 0 : index
    %c0_8 = arith.constant 0 : index
    %33 = vector.load %arg4[%c0_7, %c0_8] : memref<1x4xf32, #tpu.memory_space<vmem>>, vector<1x4xf32>
    %34 = arith.mulf %32, %33 : vector<1x4xf32>
    %35 = vector.broadcast %34 : vector<1x4xf32> to vector<8x4xf32>
    %36 = arith.mulf %24, %35 : vector<8x4xf32>
    %c0_9 = arith.constant 0 : index
    %c0_10 = arith.constant 0 : index
    %37 = vector.load %arg2[%c0_9, %c0_10] : memref<4x128xf32, #tpu.memory_space<vmem>>, vector<4x128xf32>
    %38 = vector.extract_strided_slice %36 {offsets = [0, 0], sizes = [8, 1], strides = [1, 1]} : vector<8x4xf32> to vector<8x1xf32>
    %39 = vector.extract_strided_slice %37 {offsets = [0, 0], sizes = [1, 128], strides = [1, 1]} : vector<4x128xf32> to vector<1x128xf32>
    %40 = vector.broadcast %38 : vector<8x1xf32> to vector<8x128xf32>
    %41 = vector.broadcast %39 : vector<1x128xf32> to vector<8x128xf32>
    %42 = arith.mulf %40, %41 : vector<8x128xf32>
    %43 = vector.extract_strided_slice %36 {offsets = [0, 1], sizes = [8, 1], strides = [1, 1]} : vector<8x4xf32> to vector<8x1xf32>
    %44 = vector.extract_strided_slice %37 {offsets = [1, 0], sizes = [1, 128], strides = [1, 1]} : vector<4x128xf32> to vector<1x128xf32>
    %45 = vector.broadcast %43 : vector<8x1xf32> to vector<8x128xf32>
    %46 = vector.broadcast %44 : vector<1x128xf32> to vector<8x128xf32>
    %47 = arith.mulf %45, %46 : vector<8x128xf32>
    %48 = arith.addf %42, %47 : vector<8x128xf32>
    %49 = vector.extract_strided_slice %36 {offsets = [0, 2], sizes = [8, 1], strides = [1, 1]} : vector<8x4xf32> to vector<8x1xf32>
    %50 = vector.extract_strided_slice %37 {offsets = [2, 0], sizes = [1, 128], strides = [1, 1]} : vector<4x128xf32> to vector<1x128xf32>
    %51 = vector.broadcast %49 : vector<8x1xf32> to vector<8x128xf32>
    %52 = vector.broadcast %50 : vector<1x128xf32> to vector<8x128xf32>
    %53 = arith.mulf %51, %52 : vector<8x128xf32>
    %54 = arith.addf %48, %53 : vector<8x128xf32>
    %55 = vector.extract_strided_slice %36 {offsets = [0, 3], sizes = [8, 1], strides = [1, 1]} : vector<8x4xf32> to vector<8x1xf32>
    %56 = vector.extract_strided_slice %37 {offsets = [3, 0], sizes = [1, 128], strides = [1, 1]} : vector<4x128xf32> to vector<1x128xf32>
    %57 = vector.broadcast %55 : vector<8x1xf32> to vector<8x128xf32>
    %58 = vector.broadcast %56 : vector<1x128xf32> to vector<8x128xf32>
    %59 = arith.mulf %57, %58 : vector<8x128xf32>
    %60 = arith.addf %54, %59 : vector<8x128xf32>
    %c0_11 = arith.constant 0 : index
    %c0_12 = arith.constant 0 : index
    %61 = vector.load %arg3[%c0_11, %c0_12] : memref<1x128xf32, #tpu.memory_space<vmem>>, vector<1x128xf32>
    %62 = vector.broadcast %61 : vector<1x128xf32> to vector<8x128xf32>
    %63 = arith.addf %60, %62 : vector<8x128xf32>
    %c0_13 = arith.constant 0 : index
    %c0_14 = arith.constant 0 : index
    %64 = vector.load %arg5[%c0_13, %c0_14] : memref<8x128xf32, #tpu.memory_space<vmem>>, vector<8x128xf32>
    tpu.vector_store %arg5[%c0_13, %c0_14], %63 {strides = array<i32>} : memref<8x128xf32, #tpu.memory_space<vmem>>, vector<8x128xf32>,
    return
  }
}

</mosaic_0001>

<llo_original>
// kernel: tpu_custom_call.1
$region0: #{tpu_custom_call.1}
  #allocation0 [shape = 'u32[]', space=smem, size = 0x4, offset = 0x4, fixed_abs, tag = 'smem constant byte address 0x4 - core index']
  #allocation1 [shape = 'u32[144,128]{1,0:T(1,128)}', space=vmem, size = 0x12000, scoped, tag = 'internal scratch']
  %s0 = inlined_call_operand.vmem [shape: f32[8,3], index: 0, kind: input, shape index: {}]
  %s1 = inlined_call_operand.vmem [shape: f32[3,4], index: 1, kind: input, shape index: {}]
  %s2 = inlined_call_operand.vmem [shape: f32[4,128], index: 2, kind: input, shape index: {}]
  %s3 = inlined_call_operand.vmem [shape: f32[1,128], index: 3, kind: input, shape index: {}]
  %s4 = inlined_call_operand.vmem [shape: f32[1,4], index: 4, kind: input, shape index: {}]
  %s5 = inlined_call_operand.hbm [shape: f32[8,128], index: 5, kind: output, shape index: {}]
  %s6 = sld [smem:[#allocation0]]
  $region30: #{tpu_custom_call.1} parent=0
    _
  %s8 = ssub.s32 1, %s6
  %s9 = scalar_select 0, %s8, %s6
  $region1: #{tpu_custom_call.1} parent=0
    #allocation2 [shape = 'u8[4096]{0}', space=vmem, size = 0x1000, scoped, tag = 'output window, operand 0, single buffered']
    #allocation3 [shape = 's32[1]{0}', space=sflag, size = 0x4, scoped, tag = 'scoped memory for tpu_custom_call.1']
    %10 = vsyncpa [#allocation3], 0
    // Predicated region
    $region2: #{tpu_custom_call.1} parent=1 // pred_check
      _
    $region3: #{tpu_custom_call.1} parent=1 // pred_check_branch
      %12 = sbr.rel (0) target = $region5
    $region4: #{tpu_custom_call.1} parent=1 // pred_region
      _
    $region5: #{tpu_custom_call.1} parent=1 // pred_fallthru
      _
    // Predicated region
    $region6: #{tpu_custom_call.1} parent=1 // pred_check
      _
    $region7: #{tpu_custom_call.1} parent=1 // pred_check_branch
      %14 = sbr.rel (0) target = $region9
    $region8: #{tpu_custom_call.1} parent=1 // pred_region
      _
    $region9: #{tpu_custom_call.1} parent=1 // pred_fallthru
      _
    // Predicated region
    $region10: #{tpu_custom_call.1} parent=1 // pred_check
      _
    $region11: #{tpu_custom_call.1} parent=1 // pred_check_branch
      %16 = sbr.rel (0) target = $region13
    $region12: #{tpu_custom_call.1} parent=1 // pred_region
      _
    $region13: #{tpu_custom_call.1} parent=1 // pred_fallthru
      _
    // Predicated region
    $region14: #{tpu_custom_call.1} parent=1 // pred_check
      _
    $region15: #{tpu_custom_call.1} parent=1 // pred_check_branch
      %18 = sbr.rel (0) target = $region17
    $region16: #{tpu_custom_call.1} parent=1 // pred_region
      _
    $region17: #{tpu_custom_call.1} parent=1 // pred_fallthru
      _
    // Predicated region
    $region18: #{tpu_custom_call.1} parent=1 // pred_check
      _
    $region19: #{tpu_custom_call.1} parent=1 // pred_check_branch
      %20 = sbr.rel (0) target = $region21
    $region20: #{tpu_custom_call.1} parent=1 // pred_region
      _
    $region21: #{tpu_custom_call.1} parent=1 // pred_fallthru
      _
    %v21 = vld [vmem:[%s0] sm:$0xff]
    %v22 = vld [vmem:[%s1] sm:$0x7]
    %24 = vset.pattern.permute.xlu0 0
    %25 = vperm.xlu0 %24, %v21
    %v26 = vpop.permute.xlu0 %25
    %v28 = vlaneseq
    %v29 = vshrl.u32 %v28, 7
    %v30 = vsub.s32 0, %v29
    %v31 = vrot.slane %v22, %v30
    %v32 = vmul.f32 %v26, %v31
    %33 = vset.pattern.permute.xlu0 1
    %34 = vperm.xlu0 %33, %v21
    %v35 = vpop.permute.xlu0 %34
    %v37 = vlaneseq
    %v38 = vshrl.u32 %v37, 7
    %v39 = vsub.s32 1, %v38
    %v40 = vrot.slane %v22, %v39
    %v41 = vmul.f32 %v35, %v40
    %v42 = vadd.f32 %v32, %v41
    %43 = vset.pattern.permute.xlu0 2
    %44 = vperm.xlu0 %43, %v21
    %v45 = vpop.permute.xlu0 %44
    %v47 = vlaneseq
    %v48 = vshrl.u32 %v47, 7
    %v49 = vsub.s32 2, %v48
    %v50 = vrot.slane %v22, %v49
    %v51 = vmul.f32 %v45, %v50
    %v52 = vadd.f32 %v42, %v51
    %vm53 = vcmask 31744
    %v54 = vsel %vm53, %v52, 0.0
    %v55 = vrot.slane %v54, 4
    %v56 = vadd.f32 %v54, %v55
    %v57 = vrot.slane %v56, 2
    %v58 = vadd.f32 %v56, %v57
    %v59 = vrot.slane %v58, 1
    %v60 = vadd.f32 %v58, %v59
    %v61 = vmul.f32 %v60, 0.125
    %v62 = vsub.f32 %v52, %v61
    %v63 = vmul.f32 %v62, %v62
    %v64 = vsel %vm53, %v63, 0.0
    %v65 = vrot.slane %v64, 4
    %v66 = vadd.f32 %v64, %v65
    %v67 = vrot.slane %v66, 2
    %v68 = vadd.f32 %v66, %v67
    %v69 = vrot.slane %v68, 1
    %v70 = vadd.f32 %v68, %v69
    %v71 = vmul.f32 %v70, 0.125
    %v72 = vadd.f32 %v71, 1e-05
    %v73 = vrsqrt.pop %v72
    %v74 = vld [vmem:[%s4] sm:$0x1]
    %v75 = vmul.f32 %v73, %v74
    %v76 = vlaneseq
    %v77 = vshrl.u32 %v76, 7
    %v78 = vsub.s32 0, %v77
    %v79 = vrot.slane %v75, %v78
    %v80 = vmul.f32 %v62, %v79
    %v81 = vld [vmem:[%s2] sm:$0xf]
    %83 = vset.pattern.permute.xlu0 0
    %84 = vperm.xlu0 %83, %v80
    %v85 = vpop.permute.xlu0 %84
    %v87 = vlaneseq
    %v88 = vshrl.u32 %v87, 7
    %v89 = vsub.s32 0, %v88
    %v90 = vrot.slane %v81, %v89
    %v91 = vmul.f32 %v85, %v90
    %92 = vset.pattern.permute.xlu0 1
    %93 = vperm.xlu0 %92, %v80
    %v94 = vpop.permute.xlu0 %93
    %v96 = vlaneseq
    %v97 = vshrl.u32 %v96, 7
    %v98 = vsub.s32 1, %v97
    %v99 = vrot.slane %v81, %v98
    %v100 = vmul.f32 %v94, %v99
    %v101 = vadd.f32 %v91, %v100
    %102 = vset.pattern.permute.xlu0 2
    %103 = vperm.xlu0 %102, %v80
    %v104 = vpop.permute.xlu0 %103
    %v106 = vlaneseq
    %v107 = vshrl.u32 %v106, 7
    %v108 = vsub.s32 2, %v107
    %v109 = vrot.slane %v81, %v108
    %v110 = vmul.f32 %v104, %v109
    %v111 = vadd.f32 %v101, %v110
    %112 = vset.pattern.permute.xlu0 3
    %113 = vperm.xlu0 %112, %v80
    %v114 = vpop.permute.xlu0 %113
    %v116 = vlaneseq
    %v117 = vshrl.u32 %v116, 7
    %v118 = vsub.s32 3, %v117
    %v119 = vrot.slane %v81, %v118
    %v120 = vmul.f32 %v114, %v119
    %v121 = vadd.f32 %v111, %v120
    %v122 = vld [vmem:[%s3] sm:$0x1]
    %v124 = vlaneseq
    %v125 = vshrl.u32 %v124, 7
    %v126 = vsub.s32 0, %v125
    %v127 = vrot.slane %v122, %v126
    %v129 = vadd.f32 %v121, %v127
    %130 = vst [vmem:[#allocation2] sm:$0xff] %v129
    // Predicated region
    $region22: #{tpu_custom_call.1} parent=1 // pred_check
      _
    $region23: #{tpu_custom_call.1} parent=1 // pred_check_branch
      %132 = sbr.rel (0) target = $region25
    $region24: #{tpu_custom_call.1} parent=1 // pred_region
      %s134 = ssub.s32 128, 128
      %135 = vsyncadd [#allocation3], %s134
      %s137 = sshll.u32 [#allocation2], 4
      %s138 = int_to_ptr.vmem [resolvable:$true] %s137
      %140 = dma.vmem_to_hbm [thread:$0]  %s138, 128, %s5, [#allocation3]
    $region25: #{tpu_custom_call.1} parent=1 // pred_fallthru
      _
    // Predicated region
    $region26: #{tpu_custom_call.1} parent=1 // pred_check
      _
    $region27: #{tpu_custom_call.1} parent=1 // pred_check_branch
      %142 = sbr.rel (0) target = $region29
    $region28: #{tpu_custom_call.1} parent=1 // pred_region
      %143 = dma.done [#allocation3], 128
    $region29: #{tpu_custom_call.1} parent=1 // pred_fallthru
      _
    %144 = vsyncpa [#allocation3], 1

</llo_original>
